<compile_context>
chip_gen: v5e
topology: v5e:2x2
jax: 0.10.0
libtpu: 0.0.40
codegen_flags: <defaults>
</compile_context>

<pallas_src>
import math
import functools

import jax
import jax.numpy as jnp
from jax.experimental import pallas as pl
from jax.experimental.pallas import tpu as pltpu


# ----------------------------- tiling helpers -----------------------------

def _pick_tile(dim, target, align):
    """Largest aligned divisor of `dim` that is <= target; falls back to full dim."""
    if dim <= target:
        return dim
    t = (target // align) * align
    while t >= align:
        if dim % t == 0:
            return t
        t -= align
    return dim


# ----------------------------- Pallas kernels -----------------------------

def _matmul_kernel(x_ref, w_ref, b_ref, o_ref, acc_ref, *, relu):
    """Tiled y = x @ w + b (optional ReLU), accumulating over the K grid axis."""
    @pl.when(pl.program_id(2) == 0)
    def _():
        acc_ref[...] = jnp.zeros_like(acc_ref)

    acc_ref[...] += jnp.dot(x_ref[...], w_ref[...],
                            preferred_element_type=jnp.float32)

    @pl.when(pl.program_id(2) == pl.num_programs(2) - 1)
    def _():
        y = acc_ref[...] + b_ref[...]
        if relu:
            y = jnp.maximum(y, 0.0)
        o_ref[...] = y


def linear(x, w, b, relu=False, tm=256, tk=512, tn=512):
    """y = x @ w + b ; x:(M,K), w:(K,N), b:(N,). Tiled with a f32 accumulator."""
    M, K = x.shape
    N = w.shape[1]
    tm = _pick_tile(M, tm, 8)
    tk = _pick_tile(K, tk, 128)
    tn = _pick_tile(N, tn, 128)
    grid = (M // tm, N // tn, K // tk)
    return pl.pallas_call(
        functools.partial(_matmul_kernel, relu=relu),
        grid=grid,
        in_specs=[pl.BlockSpec((tm, tk), lambda i, j, k: (i, k)),
                  pl.BlockSpec((tk, tn), lambda i, j, k: (k, j)),
                  pl.BlockSpec((1, tn), lambda i, j, k: (0, j))],
        out_specs=pl.BlockSpec((tm, tn), lambda i, j, k: (i, j)),
        out_shape=jax.ShapeDtypeStruct((M, N), jnp.float32),
        scratch_shapes=[pltpu.VMEM((tm, tn), jnp.float32)],
        compiler_params=pltpu.CompilerParams(
            dimension_semantics=("parallel", "parallel", "arbitrary")),
    )(x, w, b.reshape(1, N))


def _matmul_add_ln_kernel(x_ref, w_ref, b_ref, r_ref, g_ref, bt_ref, o_ref, acc_ref):
    """Fused: LayerNorm(resid + (x @ w + b)) over the full last dim (post-norm)."""
    k = pl.program_id(1)

    @pl.when(k == 0)
    def _():
        acc_ref[...] = jnp.zeros_like(acc_ref)

    acc_ref[...] += jnp.dot(x_ref[...], w_ref[...],
                            preferred_element_type=jnp.float32)

    @pl.when(k == pl.num_programs(1) - 1)
    def _():
        y = acc_ref[...] + b_ref[...] + r_ref[...]
        mean = jnp.mean(y, axis=-1, keepdims=True)
        var = jnp.mean((y - mean) ** 2, axis=-1, keepdims=True)
        o_ref[...] = (y - mean) * jax.lax.rsqrt(var + 1e-5) * g_ref[...] + bt_ref[...]


def linear_add_layernorm(x, w, b, resid, gamma, beta, tm=256, tk=512):
    """LayerNorm(resid + x @ w + b); x:(M,K), w:(K,N), resid:(M,N). N held whole (LN axis)."""
    M, K = x.shape
    N = w.shape[1]
    tm = _pick_tile(M, tm, 8)
    tk = _pick_tile(K, tk, 128)
    grid = (M // tm, K // tk)
    return pl.pallas_call(
        _matmul_add_ln_kernel,
        grid=grid,
        in_specs=[pl.BlockSpec((tm, tk), lambda i, k: (i, k)),
                  pl.BlockSpec((tk, N), lambda i, k: (k, 0)),
                  pl.BlockSpec((1, N), lambda i, k: (0, 0)),
                  pl.BlockSpec((tm, N), lambda i, k: (i, 0)),
                  pl.BlockSpec((1, N), lambda i, k: (0, 0)),
                  pl.BlockSpec((1, N), lambda i, k: (0, 0))],
        out_specs=pl.BlockSpec((tm, N), lambda i, k: (i, 0)),
        out_shape=jax.ShapeDtypeStruct((M, N), jnp.float32),
        scratch_shapes=[pltpu.VMEM((tm, N), jnp.float32)],
        compiler_params=pltpu.CompilerParams(
            dimension_semantics=("parallel", "arbitrary")),
    )(x, w, b.reshape(1, N), resid, gamma.reshape(1, N), beta.reshape(1, N))


def _mha_kernel(q_ref, k_ref, v_ref, o_ref, *, nhead, causal, scale):
    """All heads of one batch element; (T, D) lane-dense blocks, head split via static
    lane slices, causal mask generated in-kernel (no mask DMA)."""
    _, T, D = q_ref.shape
    dh = D // nhead
    q = q_ref[0]                     # (T, D)
    k = k_ref[0]
    v = v_ref[0]

    if causal:
        row = jax.lax.broadcasted_iota(jnp.int32, (T, T), 0)
        col = jax.lax.broadcasted_iota(jnp.int32, (T, T), 1)
        keep = row >= col
    else:
        keep = None

    outs = []
    for h in range(nhead):           # static unroll over heads
        sl = slice(h * dh, (h + 1) * dh)
        qh = q[:, sl]
        kh = k[:, sl]
        vh = v[:, sl]
        s = jnp.dot(qh, kh.T, preferred_element_type=jnp.float32) * scale
        if causal:
            s = jnp.where(keep, s, jnp.float32(-1e30))
        s = s - jnp.max(s, axis=-1, keepdims=True)
        p = jnp.exp(s)
        p = p * pl.reciprocal(jnp.sum(p, axis=-1, keepdims=True), approx=True)
        outs.append(jnp.dot(p, vh, preferred_element_type=jnp.float32))

    o_ref[0] = jnp.concatenate(outs, axis=-1)   # single full-width (T, D) store


def attention(q, k, v, nhead, causal):
    """q,k,v: (B, T, D) with heads packed along D; returns (B, T, D) context."""
    # TODO(synk): for very long sequences convert to a flash-style online softmax over a
    # KV grid axis; at block_size=128 the full (T,T) scores per batch fit VMEM easily.
    B, T, D = q.shape
    scale = 1.0 / math.sqrt(D // nhead)
    spec = pl.BlockSpec((1, T, D), lambda b: (b, 0, 0))
    return pl.pallas_call(
        functools.partial(_mha_kernel, nhead=nhead, causal=causal, scale=scale),
        grid=(B,),
        in_specs=[spec, spec, spec],
        out_specs=spec,
        out_shape=jax.ShapeDtypeStruct((B, T, D), jnp.float32),
        compiler_params=pltpu.CompilerParams(
            dimension_semantics=("parallel",)),
    )(q, k, v)


# ----------------------------- model glue -----------------------------

def decoder_layer(x, memory, p, nhead):
    """nn.TransformerDecoderLayer, post-norm, ReLU, dropout=identity."""
    B, T, D = x.shape
    xf = x.reshape(B * T, D)
    mf = memory.reshape(-1, D)
    Tk = memory.shape[1]

    # --- self-attention block (causal), fused QKV projection ---
    sp = p['self_attn']
    qkv = linear(xf, sp['wqkv'], sp['bqkv'])                  # (B*T, 3D)
    q = qkv[:, :D].reshape(B, T, D)
    k = qkv[:, D:2 * D].reshape(B, T, D)
    v = qkv[:, 2 * D:].reshape(B, T, D)
    ctx = attention(q, k, v, nhead, causal=True).reshape(B * T, D)
    # out-proj + residual add + LayerNorm fused
    xf = linear_add_layernorm(ctx, sp['wo'], sp['bo'], xf, p['ln1_g'], p['ln1_b'])

    # --- cross-attention block to memory (= tgt_emb), unmasked ---
    cp = p['cross_attn']
    q = linear(xf, cp['wq'], cp['bq']).reshape(B, T, D)
    kv = linear(mf, cp['wkv'], cp['bkv'])                     # (B*Tk, 2D)
    k = kv[:, :D].reshape(B, Tk, D)
    v = kv[:, D:].reshape(B, Tk, D)
    ctx = attention(q, k, v, nhead, causal=False).reshape(B * T, D)
    xf = linear_add_layernorm(ctx, cp['wo'], cp['bo'], xf, p['ln2_g'], p['ln2_b'])

    # --- feed-forward block (linear+ReLU, then linear + add + LN fused) ---
    h = linear(xf, p['w1'], p['b1'], relu=True)
    xf = linear_add_layernorm(h, p['w2'], p['b2'], xf, p['ln3_g'], p['ln3_b'])

    return xf.reshape(B, T, D)


def transformer_forward(params, cfg, tgt):
    B, T = tgt.shape
    D = cfg['d_model']
    # embedding lookup (gather stays in plain JAX) + sqrt(d_model) scale
    emb = params['embedding'][tgt] * jnp.float32(math.sqrt(D))          # (B,T,D)
    # PositionalEncoding quirk: pe[:x.size(0)] indexes by the BATCH dim.
    emb = emb + params['pe'][:B]                                        # (B,1,D) broadcast over T
    x = emb
    memory = emb
    for lp in params['layers']:
        x = decoder_layer(x, memory, lp, cfg['nhead'])
    logits = linear(x.reshape(B * T, D), params['fc_w'], params['fc_b'])
    return logits.reshape(B, T, cfg['ntokens'])


# ----------------------------- init -----------------------------

def init_params(key, ntokens, d_model, nhead, dff, nlayers, max_len=5000):
    n_keys = 2 + nlayers * 8
    keys = iter(jax.random.split(key, n_keys))

    def xavier(shape):
        fan_in, fan_out = shape
        bound = math.sqrt(6.0 / (fan_in + fan_out))
        return jax.random.uniform(next(keys), shape, jnp.float32, -bound, bound)

    params = {}
    params['embedding'] = xavier((ntokens, d_model))

    # positional-encoding buffer (max_len, 1, d_model), same recipe as the module
    position = jnp.arange(max_len, dtype=jnp.float32)[:, None]
    div_term = jnp.exp(jnp.arange(0, d_model, 2, dtype=jnp.float32)
                       * -(math.log(10000.0) / d_model))
    pe = jnp.zeros((max_len, 1, d_model), jnp.float32)
    pe = pe.at[:, 0, 0::2].set(jnp.sin(position * div_term))
    pe = pe.at[:, 0, 1::2].set(jnp.cos(position * div_term))
    params['pe'] = pe

    def self_attn_params():
        return {
            'wqkv': xavier((d_model, 3 * d_model)),
            'bqkv': jnp.zeros((3 * d_model,), jnp.float32),
            'wo': xavier((d_model, d_model)),
            'bo': jnp.zeros((d_model,), jnp.float32),
        }

    def cross_attn_params():
        w_in = xavier((d_model, 3 * d_model))        # fused xavier, like in_proj_weight
        return {
            'wq': w_in[:, :d_model],
            'bq': jnp.zeros((d_model,), jnp.float32),
            'wkv': w_in[:, d_model:],
            'bkv': jnp.zeros((2 * d_model,), jnp.float32),
            'wo': xavier((d_model, d_model)),
            'bo': jnp.zeros((d_model,), jnp.float32),
        }

    layers = []
    for _ in range(nlayers):
        lp = {
            'self_attn': self_attn_params(),
            'cross_attn': cross_attn_params(),
            'ln1_g': jnp.ones((d_model,), jnp.float32), 'ln1_b': jnp.zeros((d_model,), jnp.float32),
            'ln2_g': jnp.ones((d_model,), jnp.float32), 'ln2_b': jnp.zeros((d_model,), jnp.float32),
            'ln3_g': jnp.ones((d_model,), jnp.float32), 'ln3_b': jnp.zeros((d_model,), jnp.float32),
            'w1': xavier((d_model, dff)), 'b1': jnp.zeros((dff,), jnp.float32),
            'w2': xavier((dff, d_model)), 'b2': jnp.zeros((d_model,), jnp.float32),
        }
        layers.append(lp)
    params['layers'] = layers

    params['fc_w'] = xavier((d_model, ntokens))
    params['fc_b'] = jnp.zeros((ntokens,), jnp.float32)
    return params


# ----------------------------- main -----------------------------

if __name__ == "__main__":
    # small shapes consistent with the module's structure
    ntokens, d_model, nhead, dff, nlayers = 64, 32, 4, 64, 3
    B, T = 2, 8
    cfg = {'ntokens': ntokens, 'd_model': d_model, 'nhead': nhead}

    key = jax.random.PRNGKey(0)
    pkey, dkey = jax.random.split(key)
    params = init_params(pkey, ntokens, d_model, nhead, dff, nlayers, max_len=64)
    tgt = jax.random.randint(dkey, (B, T), 0, ntokens, dtype=jnp.int32)

    out = transformer_forward(params, cfg, tgt)
    out = jax.block_until_ready(out)
    assert out.shape == (B, T, ntokens), out.shape
    assert bool(jnp.all(jnp.isfinite(out)))
    print("KERNEL_OK")
</pallas_src>

<mosaic_0001>
module attributes {stable_mosaic.version = 11 : i64} {
  func.func @_matmul_kernel(%arg0: i32, %arg1: i32, %arg2: i32, %arg3: memref<16x32xf32, #tpu.memory_space<vmem>>, %arg4: memref<32x96xf32, #tpu.memory_space<vmem>>, %arg5: memref<1x96xf32, #tpu.memory_space<vmem>>, %arg6: memref<16x96xf32, #tpu.memory_space<vmem>>, %arg7: memref<16x96xf32, #tpu.memory_space<vmem>>) attributes {dimension_semantics = [#tpu.dimension_semantics<parallel>, #tpu.dimension_semantics<parallel>, #tpu.dimension_semantics<arbitrary>], iteration_bounds = array<i64: 1, 1, 1>, scalar_prefetch = 0 : i64, scratch_operands = 1 : i64, tpu.core_type = #tpu.core_type<tc>, window_params = [{transform_indices = @transform_0, window_bounds = array<i64: 16, 32>}, {transform_indices = @transform_1, window_bounds = array<i64: 32, 96>}, {transform_indices = @transform_2, window_bounds = array<i64: 1, 96>}, {transform_indices = @transform_3, window_bounds = array<i64: 16, 96>}]} {
    %c0_i32 = arith.constant 0 : i32
    %0 = arith.cmpi eq, %arg2, %c0_i32 : i32
    %1 = arith.extui %0 : i1 to i32
    %c0_i32_0 = arith.constant 0 : i32
    %2 = arith.cmpi ne, %1, %c0_i32_0 : i32
    scf.if %2 {
      %cst_10 = arith.constant 0.000000e+00 : f32
      %12 = vector.broadcast %cst_10 : f32 to vector<16x96xf32>
      %c0_11 = arith.constant 0 : index
      %c0_12 = arith.constant 0 : index
      %13 = vector.load %arg7[%c0_11, %c0_12] : memref<16x96xf32, #tpu.memory_space<vmem>>, vector<16x96xf32>
      tpu.vector_store %arg7[%c0_11, %c0_12], %12 {strides = array<i32>} : memref<16x96xf32, #tpu.memory_space<vmem>>, vector<16x96xf32>,
    } else {
    }
    %c0 = arith.constant 0 : index
    %c0_1 = arith.constant 0 : index
    %3 = vector.load %arg7[%c0, %c0_1] : memref<16x96xf32, #tpu.memory_space<vmem>>, vector<16x96xf32>
    %c0_2 = arith.constant 0 : index
    %c0_3 = arith.constant 0 : index
    %4 = vector.load %arg3[%c0_2, %c0_3] : memref<16x32xf32, #tpu.memory_space<vmem>>, vector<16x32xf32>
    %c0_4 = arith.constant 0 : index
    %c0_5 = arith.constant 0 : index
    %5 = vector.load %arg4[%c0_4, %c0_5] : memref<32x96xf32, #tpu.memory_space<vmem>>, vector<32x96xf32>
    %cst = arith.constant dense<0.000000e+00> : vector<16x96xf32>
    %6 = tpu.matmul %4, %5, %cst {dimension_numbers = #tpu.dot_dimension_numbers<[1], [0], [0], [1], [0, 0, 1, 1], [], []>} : vector<16x32xf32>, vector<32x96xf32>, vector<16x96xf32> -> vector<16x96xf32>
    %7 = arith.addf %3, %6 : vector<16x96xf32>
    %c0_6 = arith.constant 0 : index
    %c0_7 = arith.constant 0 : index
    %8 = vector.load %arg7[%c0_6, %c0_7] : memref<16x96xf32, #tpu.memory_space<vmem>>, vector<16x96xf32>
    tpu.vector_store %arg7[%c0_6, %c0_7], %7 {strides = array<i32>} : memref<16x96xf32, #tpu.memory_space<vmem>>, vector<16x96xf32>,
    %c0_i32_8 = arith.constant 0 : i32
    %9 = arith.cmpi eq, %arg2, %c0_i32_8 : i32
    %10 = arith.extui %9 : i1 to i32
    %c0_i32_9 = arith.constant 0 : i32
    %11 = arith.cmpi ne, %10, %c0_i32_9 : i32
    scf.if %11 {
      %c0_10 = arith.constant 0 : index
      %c0_11 = arith.constant 0 : index
      %12 = vector.load %arg7[%c0_10, %c0_11] : memref<16x96xf32, #tpu.memory_space<vmem>>, vector<16x96xf32>
      %c0_12 = arith.constant 0 : index
      %c0_13 = arith.constant 0 : index
      %13 = vector.load %arg5[%c0_12, %c0_13] : memref<1x96xf32, #tpu.memory_space<vmem>>, vector<1x96xf32>
      %14 = vector.broadcast %13 : vector<1x96xf32> to vector<16x96xf32>
      %15 = arith.addf %12, %14 : vector<16x96xf32>
      %c0_14 = arith.constant 0 : index
      %c0_15 = arith.constant 0 : index
      %16 = vector.load %arg6[%c0_14, %c0_15] : memref<16x96xf32, #tpu.memory_space<vmem>>, vector<16x96xf32>
      tpu.vector_store %arg6[%c0_14, %c0_15], %15 {strides = array<i32>} : memref<16x96xf32, #tpu.memory_space<vmem>>, vector<16x96xf32>,
    } else {
    }
    return
  }
  func.func @transform_0(%arg0: i32, %arg1: i32, %arg2: i32) -> (i32, i32) {
    %c0_i32 = arith.constant 0 : i32
    return %arg0, %arg2 : i32, i32
  }
  func.func @transform_1(%arg0: i32, %arg1: i32, %arg2: i32) -> (i32, i32) {
    %c0_i32 = arith.constant 0 : i32
    return %arg2, %arg1 : i32, i32
  }
  func.func @transform_2(%arg0: i32, %arg1: i32, %arg2: i32) -> (i32, i32) {
    %c0_i32 = arith.constant 0 : i32
    %c0_i32_0 = arith.constant 0 : i32
    return %c0_i32, %arg1 : i32, i32
  }
  func.func @transform_3(%arg0: i32, %arg1: i32, %arg2: i32) -> (i32, i32) {
    %c0_i32 = arith.constant 0 : i32
    return %arg0, %arg1 : i32, i32
  }
}

</mosaic_0001>

<llo_original>
// kernel: tpu_custom_call.1
$region0: #{tpu_custom_call.1}
  #allocation0 [shape = 'u32[]', space=smem, size = 0x4, offset = 0x4, fixed_abs, tag = 'smem constant byte address 0x4 - core index']
  #allocation1 [shape = 'u32[72,128]{1,0:T(1,128)}', space=vmem, size = 0x9000, scoped, tag = 'internal scratch']
  #allocation2 [shape = 'f32[16,96]{1,0:T(8,128)}', space=vmem, size = 0x2000, scoped, tag = 'scratch operand']
  %s0 = inlined_call_operand.hbm [shape: f32[16,32], index: 0, kind: input, shape index: {}]
  %s1 = inlined_call_operand.hbm [shape: f32[32,96], index: 1, kind: input, shape index: {}]
  %s2 = inlined_call_operand.vmem [shape: f32[1,96], index: 2, kind: input, shape index: {}]
  %s3 = inlined_call_operand.hbm [shape: f32[16,96], index: 3, kind: output, shape index: {}]
  %s4 = sld [smem:[#allocation0]]
  $region38: #{tpu_custom_call.1} parent=0
    _
  %s6 = ssub.s32 1, %s4
  %s7 = scalar_select 0, %s6, %s4
  $region1: #{tpu_custom_call.1} parent=0
    #allocation3 [shape = 'u8[8192]{0}', space=vmem, size = 0x2000, scoped, tag = 'input window, operand 0, single buffered']
    #allocation4 [shape = 's32[1]{0}', space=sflag, size = 0x4, scoped, tag = 'scoped memory for tpu_custom_call.1']
    #allocation5 [shape = 's32[1]{0}', space=sflag, size = 0x4, scoped, tag = 'scoped memory for tpu_custom_call.1']
    #allocation6 [shape = 'u8[16384]{0}', space=vmem, size = 0x4000, scoped, tag = 'input window, operand 1, single buffered']
    #allocation7 [shape = 's32[1]{0}', space=sflag, size = 0x4, scoped, tag = 'scoped memory for tpu_custom_call.1']
    #allocation8 [shape = 'u8[8192]{0}', space=vmem, size = 0x2000, scoped, tag = 'output window, operand 0, single buffered']
    %8 = vsyncpa [#allocation4], 0
    %9 = vsyncpa [#allocation7], 0
    %10 = vsyncpa [#allocation5], 0
    // Predicated region
    $region2: #{tpu_custom_call.1} parent=1 // pred_check
      _
    $region3: #{tpu_custom_call.1} parent=1 // pred_check_branch
      %12 = sbr.rel (0) target = $region5
    $region4: #{tpu_custom_call.1} parent=1 // pred_region
      %14 = vsyncadd [#allocation4], 0
      %s15 = sshll.u32 %s0, 4
      %s16 = int_to_ptr.hbm [resolvable:$true] %s15
      %s17 = sshll.u32 [#allocation3], 4
      %s18 = int_to_ptr.vmem [resolvable:$true] %s17
      %23 = dma.hbm_to_vmem [thread:$0]  %s16, 256, %s18, [#allocation4], 128, 128, 8
    $region5: #{tpu_custom_call.1} parent=1 // pred_fallthru
      _
    // Predicated region
    $region6: #{tpu_custom_call.1} parent=1 // pred_check
      _
    $region7: #{tpu_custom_call.1} parent=1 // pred_check_branch
      %25 = sbr.rel (0) target = $region9
    $region8: #{tpu_custom_call.1} parent=1 // pred_region
      %27 = vsyncadd [#allocation7], 0
      %s28 = sshll.u32 %s1, 4
      %s29 = int_to_ptr.hbm [resolvable:$true] %s28
      %s30 = sshll.u32 [#allocation6], 4
      %s31 = int_to_ptr.vmem [resolvable:$true] %s30
      %36 = dma.hbm_to_vmem [thread:$0]  %s29, 512, %s31, [#allocation7], 128, 128, 8
    $region9: #{tpu_custom_call.1} parent=1 // pred_fallthru
      _
    // Predicated region
    $region10: #{tpu_custom_call.1} parent=1 // pred_check
      _
    $region11: #{tpu_custom_call.1} parent=1 // pred_check_branch
      %38 = sbr.rel (0) target = $region13
    $region12: #{tpu_custom_call.1} parent=1 // pred_region
      _
    $region13: #{tpu_custom_call.1} parent=1 // pred_fallthru
      _
    // Predicated region
    $region14: #{tpu_custom_call.1} parent=1 // pred_check
      _
    $region15: #{tpu_custom_call.1} parent=1 // pred_check_branch
      %40 = sbr.rel (0) target = $region17
    $region16: #{tpu_custom_call.1} parent=1 // pred_region
      %42 = dma.done [#allocation4], 256
    $region17: #{tpu_custom_call.1} parent=1 // pred_fallthru
      _
    // Predicated region
    $region18: #{tpu_custom_call.1} parent=1 // pred_check
      _
    $region19: #{tpu_custom_call.1} parent=1 // pred_check_branch
      %44 = sbr.rel (0) target = $region21
    $region20: #{tpu_custom_call.1} parent=1 // pred_region
      %46 = dma.done [#allocation7], 512
    $region21: #{tpu_custom_call.1} parent=1 // pred_fallthru
      _
    %p47 = scmp.eq.s32.totalorder 0, 0
    // Predicated region
    $region22: #{tpu_custom_call.1} parent=1 // pred_check
      %p48 = pneg %p47
    $region23: #{tpu_custom_call.1} parent=1 // pred_check_branch
      %50 = sbr.rel (%p48) target = $region25
    $region24: #{tpu_custom_call.1} parent=1 // pred_region
      %vm51 = vcmask 785408
      %52 = vst.msk [vmem:[#allocation2] sm:$0xff] %vm51, 0.0
      %53 = vst.msk [vmem:[#allocation2 + $0x8] sm:$0xff] %vm51, 0.0
    $region25: #{tpu_custom_call.1} parent=1 // pred_fallthru
      _
    %v54 = vld [vmem:[#allocation2] sm:$0xff]
    %v55 = vld [vmem:[#allocation2 + $0x8] sm:$0xff]
    %v56 = vld [vmem:[#allocation3] sm:$0xff]
    %v57 = vld [vmem:[#allocation3 + $0x8] sm:$0xff]
    %v58 = vld [vmem:[#allocation6] sm:$0xff]
    %v59 = vld [vmem:[#allocation6 + $0x8] sm:$0xff]
    %v60 = vld [vmem:[#allocation6 + $0x10] sm:$0xff]
    %v61 = vld [vmem:[#allocation6 + $0x18] sm:$0xff]
    %vm62 = vcmask 261120
    %v64 = vsel %vm62, %v56, 0
    %v67 = vsel %vm62, %v57, 0
    %69 = vmatpush.msra.mxu0 0.0
    %70 = vmatpush.msra.mxu0 0.0
    %71 = vmatpush.msra.mxu0 0.0
    %72 = vmatpush.msra.mxu0 0.0
    %73 = vmatpush.msra.mxu0 0.0
    %74 = vmatpush.msra.mxu0 0.0
    %75 = vmatpush.msra.mxu0 0.0
    %76 = vmatpush.msra.mxu0 0.0
    %77 = vmatpush.msra.mxu0 0.0
    %78 = vmatpush.msra.mxu0 0.0
    %79 = vmatpush.msra.mxu0 0.0
    %80 = vmatpush.msra.mxu0 0.0
    %81 = vmatpush.msra.mxu0 %v61
    %82 = vmatpush.msra.mxu0 %v60
    %83 = vmatpush.msra.mxu0 %v59
    %84 = vmatpush.msra.mxu0 %v58
    %85 = vmatmul.f32.gmra.mxu0 %v64
    %v86 = vpop.f32.mrf.mxu0
    %v87 = vadd.f32 0.0, %v86
    %88 = vmatmul.f32.gmra.mxu0 %v67
    %v89 = vpop.f32.mrf.mxu0
    %v90 = vadd.f32 0.0, %v89
    %91 = vdwg.mxu0
    %v92 = vadd.f32 %v54, %v87
    %v93 = vadd.f32 %v55, %v90
    %vm94 = vcmask 785408
    %95 = vst.msk [vmem:[#allocation2] sm:$0xff] %vm94, %v92
    %96 = vst.msk [vmem:[#allocation2 + $0x8] sm:$0xff] %vm94, %v93
    // Predicated region
    $region26: #{tpu_custom_call.1} parent=1 // pred_check
      %p97 = pneg %p47
    $region27: #{tpu_custom_call.1} parent=1 // pred_check_branch
      %99 = sbr.rel (%p97) target = $region29
    $region28: #{tpu_custom_call.1} parent=1 // pred_region
      %v100 = vld [vmem:[#allocation2] sm:$0xff]
      %v101 = vld [vmem:[#allocation2 + $0x8] sm:$0xff]
      %v102 = vld [vmem:[%s2] sm:$0x1]
      %v104 = vperm.slane %v102, 0
      %v106 = vadd.f32 %v100, %v104
      %v107 = vadd.f32 %v101, %v104
      %108 = vst.msk [vmem:[#allocation8] sm:$0xff] %vm94, %v106
      %109 = vst.msk [vmem:[#allocation8 + $0x8] sm:$0xff] %vm94, %v107
    $region29: #{tpu_custom_call.1} parent=1 // pred_fallthru
      _
    // Predicated region
    $region30: #{tpu_custom_call.1} parent=1 // pred_check
      _
    $region31: #{tpu_custom_call.1} parent=1 // pred_check_branch
      %111 = sbr.rel (0) target = $region33
    $region32: #{tpu_custom_call.1} parent=1 // pred_region
      %113 = vsyncadd [#allocation5], 0
      %s114 = sshll.u32 [#allocation8], 4
      %s115 = int_to_ptr.vmem [resolvable:$true] %s114
      %s116 = sshll.u32 %s3, 4
      %s117 = int_to_ptr.hbm [resolvable:$true] %s116
      %122 = dma.vmem_to_hbm [thread:$0]  %s115, 256, %s117, [#allocation5], 128, 128, 8
    $region33: #{tpu_custom_call.1} parent=1 // pred_fallthru
      _
    // Predicated region
    $region34: #{tpu_custom_call.1} parent=1 // pred_check
      _
    $region35: #{tpu_custom_call.1} parent=1 // pred_check_branch
      %124 = sbr.rel (0) target = $region37
    $region36: #{tpu_custom_call.1} parent=1 // pred_region
      %126 = dma.done [#allocation5], 256
    $region37: #{tpu_custom_call.1} parent=1 // pred_fallthru
      _
    %127 = vsyncpa [#allocation4], 1
    %128 = vsyncpa [#allocation7], 1
    %129 = vsyncpa [#allocation5], 1

</llo_original>
